<compile_context>
chip_gen: v6e
topology: v6e:2x2x1
jax: 0.10.0
libtpu: 0.0.40
codegen_flags: <defaults>
</compile_context>

<pallas_src>
import jax
import jax.numpy as jnp
from jax import lax
from jax.experimental import pallas as pl
from jax.experimental.pallas import tpu as pltpu


# ---------------- Pass 1: 1x1-conv projections (Q, K, V) in bf16 -------------

def _proj_kernel(x_ref, wq_ref, wk_ref, wv_ref, bq_ref, q_ref, k_ref, v_ref):
    # x_ref: (1, C, tp) bf16; wq/wk: (Cq, C) bf16; wv: (C, C) bf16; bq: (Cq, 1) f32.
    x = x_ref[0]                                                     # (C, tp)
    q = jnp.dot(wq_ref[...], x, preferred_element_type=jnp.float32) + bq_ref[...]
    q_ref[0] = q.astype(jnp.bfloat16)
    # bk is dropped: softmax(q.(k + bk)) == softmax(q.k) (per-query constant).
    k_ref[0] = jnp.dot(wk_ref[...], x,
                       preferred_element_type=jnp.float32).astype(jnp.bfloat16)
    # bv is applied once at finalize in the attention pass (rows sum to 1).
    v_ref[0] = jnp.dot(wv_ref[...], x,
                       preferred_element_type=jnp.float32).astype(jnp.bfloat16)


def _project_qkv(x_bf16, wq_b, bq_f, wk_b, wv_b, *, tp):
    B, C, HWp = x_bf16.shape
    Cq = wq_b.shape[0]
    nt = HWp // tp
    return pl.pallas_call(
        _proj_kernel,
        out_shape=(jax.ShapeDtypeStruct((B, Cq, HWp), jnp.bfloat16),
                   jax.ShapeDtypeStruct((B, Cq, HWp), jnp.bfloat16),
                   jax.ShapeDtypeStruct((B, C, HWp), jnp.bfloat16)),
        grid=(B, nt),
        in_specs=[
            pl.BlockSpec((1, C, tp), lambda b, t: (b, 0, t)),   # x (bf16)
            pl.BlockSpec((Cq, C), lambda b, t: (0, 0)),         # wq
            pl.BlockSpec((Cq, C), lambda b, t: (0, 0)),         # wk
            pl.BlockSpec((C, C), lambda b, t: (0, 0)),          # wv
            pl.BlockSpec((Cq, 1), lambda b, t: (0, 0)),         # bq
        ],
        out_specs=[
            pl.BlockSpec((1, Cq, tp), lambda b, t: (b, 0, t)),  # Q
            pl.BlockSpec((1, Cq, tp), lambda b, t: (b, 0, t)),  # K
            pl.BlockSpec((1, C, tp), lambda b, t: (b, 0, t)),   # V
        ],
        compiler_params=pltpu.CompilerParams(
            dimension_semantics=("parallel", "parallel"),
            vmem_limit_bytes=32 * 1024 * 1024),
    )(x_bf16, wq_b, wk_b, wv_b, bq_f)


# ---------------- Pass 2: flash-style position attention ---------------------

def _make_attn_kernel(hw_real, hw_pad, tk):
    needs_mask = hw_pad != hw_real

    def kernel(x_ref, q_ref, k_ref, v_ref, bv_ref, gamma_ref, out_ref,
               m_sc, l_sc, acc_sc):
        # x_ref : (1, C, tq) f32   residual slab for this query tile
        # q_ref : (1, Cq, tq) bf16 precomputed Q tile
        # k_ref : (1, Cq, tk) bf16 precomputed K tile
        # v_ref : (1, C, tk) bf16  precomputed V tile
        # bv_ref: (C, 1) f32       value bias (applied once at finalize)
        # gamma_ref: (1, 1) f32 SMEM scalar
        kj = pl.program_id(2)
        nk = pl.num_programs(2)

        @pl.when(kj == 0)
        def _init():
            m_sc[...] = jnp.full_like(m_sc, -jnp.inf)
            l_sc[...] = jnp.zeros_like(l_sc)
            acc_sc[...] = jnp.zeros_like(acc_sc)

        q = q_ref[0]                                             # (Cq, tq)
        k = k_ref[0]                                             # (Cq, tk)
        v = v_ref[0]                                             # (C,  tk)

        # s[j, i] = <k_j, q_i> -> (tk, tq): softmax runs over j (axis 0) so the
        # running max / denom stay lane-shaped (1, tq).
        s = lax.dot_general(k, q, (((0,), (0,)), ((), ())),
                            preferred_element_type=jnp.float32)  # (tk, tq)

        if needs_mask:
            key_idx = kj * tk + lax.broadcasted_iota(jnp.int32, s.shape, 0)
            s = jnp.where(key_idx < hw_real, s, -jnp.inf)

        m_prev = m_sc[...]                                       # (1, tq)
        m_new = jnp.maximum(m_prev, jnp.max(s, axis=0, keepdims=True))
        alpha = jnp.exp(m_prev - m_new)                          # (1, tq)
        p = jnp.exp(s - m_new)                                   # (tk, tq) f32

        l_sc[...] = alpha * l_sc[...] + jnp.sum(p, axis=0, keepdims=True)
        acc_sc[...] = alpha * acc_sc[...] + jnp.dot(
            v, p.astype(jnp.bfloat16), preferred_element_type=jnp.float32)
        m_sc[...] = m_new

        @pl.when(kj == nk - 1)
        def _finalize():
            inv_l = pl.reciprocal(l_sc[...], approx=True)        # EUP slot
            attn_out = acc_sc[...] * inv_l + bv_ref[...]         # (C, tq) f32
            gamma = gamma_ref[0, 0]
            out_ref[0] = (gamma * attn_out + x_ref[0]).astype(out_ref.dtype)

    return kernel


def _round_up(n, m):
    return ((n + m - 1) // m) * m


def _pick_tile(hw_pad, target):
    """Largest multiple of 128 that divides hw_pad and is <= max(target, 128)."""
    t = max(128, min(target, hw_pad) // 128 * 128)
    while hw_pad % t != 0:
        t -= 128
    return t


def pam_forward(x_nchw, params, *, tq=None, tk=None):
    """x_nchw: (B, C, H, W).  params = (wq, bq, wk, bk, wv, bv, gamma)
    with wq/wk: (C//8, C), wv: (C, C), biases (out, 1), gamma (1, 1)."""
    wq, bq, wk, bk, wv, bv, gamma = params
    del bk  # exactly cancelled by the softmax (per-query constant in energy)
    B, C, H, W = x_nchw.shape
    HW = H * W
    Cq = wq.shape[0]

    HWp = _round_up(HW, 128)

    # NCHW -> (B, C, HW) is a pure reshape; pad the spatial axis to a 128
    # multiple so every tile stays lane-dense.
    x_f32 = x_nchw.reshape(B, C, HW).astype(jnp.float32)
    if HWp != HW:
        x_f32 = jnp.pad(x_f32, ((0, 0), (0, 0), (0, HWp - HW)))
    x_bf16 = x_f32.astype(jnp.bfloat16)

    # Pre-cast weights to bf16 once (MXU operands), biases stay f32.
    wq_b = wq.astype(jnp.bfloat16)
    wk_b = wk.astype(jnp.bfloat16)
    wv_b = wv.astype(jnp.bfloat16)
    bq_f = bq.astype(jnp.float32).reshape(Cq, 1)
    bv_f = bv.astype(jnp.float32).reshape(C, 1)
    gamma_f = jnp.asarray(gamma, jnp.float32).reshape(1, 1)

    tq = _pick_tile(HWp, 512) if tq is None else tq
    tk = _pick_tile(HWp, 1024) if tk is None else tk
    assert HWp % tq == 0 and tq % 128 == 0, "tq must be a 128-multiple divisor"
    assert HWp % tk == 0 and tk % 128 == 0, "tk must be a 128-multiple divisor"
    nq, nk = HWp // tq, HWp // tk

    # Pass 1: Q/K/V projections, once per batch element, stored bf16 in HBM.
    tp = _pick_tile(HWp, 512)
    q_all, k_all, v_all = _project_qkv(x_bf16, wq_b, bq_f, wk_b, wv_b, tp=tp)

    # Advisory cost estimate for the attention pass.
    cost = pl.CostEstimate(
        flops=int(B * 2 * (Cq + C) * HWp * HWp),
        transcendentals=int(B * HWp * HWp),
        bytes_accessed=int(B * HWp * (8 * C + 2 * Cq + nq * 2 * (Cq + C))),
    )

    out_pad = pl.pallas_call(
        _make_attn_kernel(HW, HWp, tk),
        out_shape=jax.ShapeDtypeStruct((B, C, HWp), jnp.float32),
        grid=(B, nq, nk),
        in_specs=[
            pl.BlockSpec((1, C, tq), lambda b, qi, kj: (b, 0, qi)),   # x (residual)
            pl.BlockSpec((1, Cq, tq), lambda b, qi, kj: (b, 0, qi)),  # Q (bf16)
            pl.BlockSpec((1, Cq, tk), lambda b, qi, kj: (b, 0, kj)),  # K (bf16)
            pl.BlockSpec((1, C, tk), lambda b, qi, kj: (b, 0, kj)),   # V (bf16)
            pl.BlockSpec((C, 1), lambda b, qi, kj: (0, 0)),           # bv
            pl.BlockSpec(memory_space=pltpu.MemorySpace.SMEM),        # gamma
        ],
        out_specs=pl.BlockSpec((1, C, tq), lambda b, qi, kj: (b, 0, qi)),
        scratch_shapes=[
            pltpu.VMEM((1, tq), jnp.float32),     # running max  m
            pltpu.VMEM((1, tq), jnp.float32),     # running sum  l
            pltpu.VMEM((C, tq), jnp.float32),     # output accumulator
        ],
        compiler_params=pltpu.CompilerParams(
            dimension_semantics=("parallel", "parallel", "arbitrary"),
            vmem_limit_bytes=32 * 1024 * 1024),
        cost_estimate=cost,
    )(x_f32, q_all, k_all, v_all, bv_f, gamma_f)

    out = out_pad[:, :, :HW] if HWp != HW else out_pad
    return out.reshape(B, C, H, W)


def pam_reference(x_nchw, params):
    """Pure-JAX reference with the original (un-simplified) bias placement."""
    wq, bq, wk, bk, wv, bv, gamma = params
    B, C, H, W = x_nchw.shape
    xf = x_nchw.reshape(B, C, H * W).astype(jnp.float32)       # (B, C, HW)
    q = jnp.einsum('oc,bcp->bop', wq, xf) + bq[None]           # (B, Cq, HW)
    k = jnp.einsum('oc,bcp->bop', wk, xf) + bk[None]
    v = jnp.einsum('oc,bcp->bop', wv, xf) + bv[None]           # (B, C, HW)
    energy = jnp.einsum('bci,bcj->bij', q, k)                  # (B, HW, HW)
    attn = jax.nn.softmax(energy, axis=-1)
    o = jnp.einsum('bcj,bij->bci', v, attn)                    # (B, C, HW)
    out = gamma.reshape(()) * o + xf
    return out.reshape(B, C, H, W)


if __name__ == "__main__":
    # Small shapes consistent with the module (in_dim multiple of 8; Cq = C//8).
    B, C, H, W = 2, 16, 16, 16
    Cq = C // 8

    key = jax.random.PRNGKey(0)
    kx, kq, kbq, kk, kbk, kv, kbv, kx2 = jax.random.split(key, 8)

    x = jax.random.normal(kx, (B, C, H, W), dtype=jnp.float32)

    # 1x1 conv weights (out, in, 1, 1) stored as (out, in); biases (out, 1).
    wq = 0.1 * jax.random.normal(kq, (Cq, C), dtype=jnp.float32)
    bq = 0.1 * jax.random.normal(kbq, (Cq, 1), dtype=jnp.float32)
    wk = 0.1 * jax.random.normal(kk, (Cq, C), dtype=jnp.float32)
    bk = 0.1 * jax.random.normal(kbk, (Cq, 1), dtype=jnp.float32)
    wv = 0.1 * jax.random.normal(kv, (C, C), dtype=jnp.float32)
    bv = 0.1 * jax.random.normal(kbv, (C, 1), dtype=jnp.float32)
    gamma0 = jnp.zeros((1, 1), dtype=jnp.float32)   # Parameter(torch.zeros(1))

    # Multi-tile online softmax (HW = 256 -> 2 query tiles x 2 KV tiles).
    params0 = (wq, bq, wk, bk, wv, bv, gamma0)
    out0 = jax.block_until_ready(pam_forward(x, params0, tq=128, tk=128))
    ref0 = pam_reference(x, params0)
    assert jnp.allclose(out0, ref0, atol=2e-2, rtol=2e-2)

    # Nonzero gamma exercises the attention contribution.
    params1 = (wq, bq, wk, bk, wv, bv, jnp.full((1, 1), 0.5, jnp.float32))
    out1 = jax.block_until_ready(pam_forward(x, params1, tq=128, tk=128))
    ref1 = pam_reference(x, params1)
    assert jnp.allclose(out1, ref1, atol=2e-2, rtol=2e-2)

    # Default tiling (single kv tile -> K/V stay resident across query tiles).
    out2 = jax.block_until_ready(pam_forward(x, params1))
    assert jnp.allclose(out2, ref1, atol=2e-2, rtol=2e-2)

    # Non-128-multiple spatial size (HW = 144) exercises pad + key-mask path.
    x2 = jax.random.normal(kx2, (B, C, 12, 12), dtype=jnp.float32)
    out3 = jax.block_until_ready(pam_forward(x2, params1, tq=128, tk=128))
    ref3 = pam_reference(x2, params1)
    assert jnp.allclose(out3, ref3, atol=2e-2, rtol=2e-2)

    print("KERNEL_OK")
</pallas_src>

<mosaic_0001>
module attributes {stable_mosaic.version = 11 : i64} {
  func.func @_proj_kernel(%arg0: i32, %arg1: i32, %arg2: memref<1x16x256xbf16, #tpu.memory_space<vmem>>, %arg3: memref<2x16xbf16, #tpu.memory_space<vmem>>, %arg4: memref<2x16xbf16, #tpu.memory_space<vmem>>, %arg5: memref<16x16xbf16, #tpu.memory_space<vmem>>, %arg6: memref<2x1xf32, #tpu.memory_space<vmem>>, %arg7: memref<1x2x256xbf16, #tpu.memory_space<vmem>>, %arg8: memref<1x2x256xbf16, #tpu.memory_space<vmem>>, %arg9: memref<1x16x256xbf16, #tpu.memory_space<vmem>>) attributes {dimension_semantics = [#tpu.dimension_semantics<parallel>, #tpu.dimension_semantics<parallel>], iteration_bounds = array<i64: 2, 1>, scalar_prefetch = 0 : i64, scratch_operands = 0 : i64, tpu.core_type = #tpu.core_type<tc>, window_params = [{transform_indices = @transform_0, window_bounds = array<i64: 1, 16, 256>}, {pipeline_mode = #tpu.pipeline_mode<synchronous>, transform_indices = @transform_1, window_bounds = array<i64: 2, 16>}, {pipeline_mode = #tpu.pipeline_mode<synchronous>, transform_indices = @transform_2, window_bounds = array<i64: 2, 16>}, {pipeline_mode = #tpu.pipeline_mode<synchronous>, transform_indices = @transform_3, window_bounds = array<i64: 16, 16>}, {pipeline_mode = #tpu.pipeline_mode<synchronous>, transform_indices = @transform_4, window_bounds = array<i64: 2, 1>}, {transform_indices = @transform_5, window_bounds = array<i64: 1, 2, 256>}, {transform_indices = @transform_6, window_bounds = array<i64: 1, 2, 256>}, {transform_indices = @transform_7, window_bounds = array<i64: 1, 16, 256>}]} {
    %c0 = arith.constant 0 : index
    %c0_0 = arith.constant 0 : index
    %c0_1 = arith.constant 0 : index
    %0 = vector.load %arg2[%c0, %c0_0, %c0_1] : memref<1x16x256xbf16, #tpu.memory_space<vmem>>, vector<1x16x256xbf16>
    %1 = vector.shape_cast %0 : vector<1x16x256xbf16> to vector<16x256xbf16>
    %c0_2 = arith.constant 0 : index
    %c0_3 = arith.constant 0 : index
    %2 = vector.load %arg3[%c0_2, %c0_3] : memref<2x16xbf16, #tpu.memory_space<vmem>>, vector<2x16xbf16>
    %cst = arith.constant dense<0.000000e+00> : vector<2x256xf32>
    %3 = tpu.matmul %2, %1, %cst {dimension_numbers = #tpu.dot_dimension_numbers<[1], [0], [0], [1], [0, 0, 1, 1], [], []>} : vector<2x16xbf16>, vector<16x256xbf16>, vector<2x256xf32> -> vector<2x256xf32>
    %c0_4 = arith.constant 0 : index
    %c0_5 = arith.constant 0 : index
    %4 = vector.load %arg6[%c0_4, %c0_5] : memref<2x1xf32, #tpu.memory_space<vmem>>, vector<2x1xf32>
    %5 = vector.broadcast %4 : vector<2x1xf32> to vector<2x256xf32>
    %6 = arith.addf %3, %5 : vector<2x256xf32>
    %7 = arith.truncf %6 : vector<2x256xf32> to vector<2x256xbf16>
    %c0_6 = arith.constant 0 : index
    %c0_7 = arith.constant 0 : index
    %c0_8 = arith.constant 0 : index
    %8 = vector.load %arg7[%c0_6, %c0_7, %c0_8] : memref<1x2x256xbf16, #tpu.memory_space<vmem>>, vector<1x2x256xbf16>
    %9 = vector.shape_cast %8 : vector<1x2x256xbf16> to vector<2x256xbf16>
    %10 = vector.shape_cast %7 : vector<2x256xbf16> to vector<1x2x256xbf16>
    tpu.vector_store %arg7[%c0_6, %c0_7, %c0_8], %10 {strides = array<i32>} : memref<1x2x256xbf16, #tpu.memory_space<vmem>>, vector<1x2x256xbf16>,
    %c0_9 = arith.constant 0 : index
    %c0_10 = arith.constant 0 : index
    %11 = vector.load %arg4[%c0_9, %c0_10] : memref<2x16xbf16, #tpu.memory_space<vmem>>, vector<2x16xbf16>
    %cst_11 = arith.constant dense<0.000000e+00> : vector<2x256xf32>
    %12 = tpu.matmul %11, %1, %cst_11 {dimension_numbers = #tpu.dot_dimension_numbers<[1], [0], [0], [1], [0, 0, 1, 1], [], []>} : vector<2x16xbf16>, vector<16x256xbf16>, vector<2x256xf32> -> vector<2x256xf32>
    %13 = arith.truncf %12 : vector<2x256xf32> to vector<2x256xbf16>
    %c0_12 = arith.constant 0 : index
    %c0_13 = arith.constant 0 : index
    %c0_14 = arith.constant 0 : index
    %14 = vector.load %arg8[%c0_12, %c0_13, %c0_14] : memref<1x2x256xbf16, #tpu.memory_space<vmem>>, vector<1x2x256xbf16>
    %15 = vector.shape_cast %14 : vector<1x2x256xbf16> to vector<2x256xbf16>
    %16 = vector.shape_cast %13 : vector<2x256xbf16> to vector<1x2x256xbf16>
    tpu.vector_store %arg8[%c0_12, %c0_13, %c0_14], %16 {strides = array<i32>} : memref<1x2x256xbf16, #tpu.memory_space<vmem>>, vector<1x2x256xbf16>,
    %c0_15 = arith.constant 0 : index
    %c0_16 = arith.constant 0 : index
    %17 = vector.load %arg5[%c0_15, %c0_16] : memref<16x16xbf16, #tpu.memory_space<vmem>>, vector<16x16xbf16>
    %cst_17 = arith.constant dense<0.000000e+00> : vector<16x256xf32>
    %18 = tpu.matmul %17, %1, %cst_17 {dimension_numbers = #tpu.dot_dimension_numbers<[1], [0], [0], [1], [0, 0, 1, 1], [], []>} : vector<16x16xbf16>, vector<16x256xbf16>, vector<16x256xf32> -> vector<16x256xf32>
    %19 = arith.truncf %18 : vector<16x256xf32> to vector<16x256xbf16>
    %c0_18 = arith.constant 0 : index
    %c0_19 = arith.constant 0 : index
    %c0_20 = arith.constant 0 : index
    %20 = vector.load %arg9[%c0_18, %c0_19, %c0_20] : memref<1x16x256xbf16, #tpu.memory_space<vmem>>, vector<1x16x256xbf16>
    %21 = vector.shape_cast %20 : vector<1x16x256xbf16> to vector<16x256xbf16>
    %22 = vector.shape_cast %19 : vector<16x256xbf16> to vector<1x16x256xbf16>
    tpu.vector_store %arg9[%c0_18, %c0_19, %c0_20], %22 {strides = array<i32>} : memref<1x16x256xbf16, #tpu.memory_space<vmem>>, vector<1x16x256xbf16>,
    return
  }
  func.func @transform_0(%arg0: i32, %arg1: i32) -> (i32, i32, i32) {
    %c0_i32 = arith.constant 0 : i32
    %c0_i32_0 = arith.constant 0 : i32
    return %arg0, %c0_i32, %arg1 : i32, i32, i32
  }
  func.func @transform_1(%arg0: i32, %arg1: i32) -> (i32, i32) {
    %c0_i32 = arith.constant 0 : i32
    %c0_i32_0 = arith.constant 0 : i32
    %c0_i32_1 = arith.constant 0 : i32
    return %c0_i32, %c0_i32_0 : i32, i32
  }
  func.func @transform_2(%arg0: i32, %arg1: i32) -> (i32, i32) {
    %c0_i32 = arith.constant 0 : i32
    %c0_i32_0 = arith.constant 0 : i32
    %c0_i32_1 = arith.constant 0 : i32
    return %c0_i32, %c0_i32_0 : i32, i32
  }
  func.func @transform_3(%arg0: i32, %arg1: i32) -> (i32, i32) {
    %c0_i32 = arith.constant 0 : i32
    %c0_i32_0 = arith.constant 0 : i32
    %c0_i32_1 = arith.constant 0 : i32
    return %c0_i32, %c0_i32_0 : i32, i32
  }
  func.func @transform_4(%arg0: i32, %arg1: i32) -> (i32, i32) {
    %c0_i32 = arith.constant 0 : i32
    %c0_i32_0 = arith.constant 0 : i32
    %c0_i32_1 = arith.constant 0 : i32
    return %c0_i32, %c0_i32_0 : i32, i32
  }
  func.func @transform_5(%arg0: i32, %arg1: i32) -> (i32, i32, i32) {
    %c0_i32 = arith.constant 0 : i32
    %c0_i32_0 = arith.constant 0 : i32
    return %arg0, %c0_i32, %arg1 : i32, i32, i32
  }
  func.func @transform_6(%arg0: i32, %arg1: i32) -> (i32, i32, i32) {
    %c0_i32 = arith.constant 0 : i32
    %c0_i32_0 = arith.constant 0 : i32
    return %arg0, %c0_i32, %arg1 : i32, i32, i32
  }
  func.func @transform_7(%arg0: i32, %arg1: i32) -> (i32, i32, i32) {
    %c0_i32 = arith.constant 0 : i32
    %c0_i32_0 = arith.constant 0 : i32
    return %arg0, %c0_i32, %arg1 : i32, i32, i32
  }
}

</mosaic_0001>

<llo_original>
// kernel: tpu_custom_call.1
$region0: #{tpu_custom_call.1}
  #allocation0 [shape = 'u32[]', space=smem, size = 0x4, offset = 0x4, fixed_abs, tag = 'smem constant byte address 0x4 - core index']
  #allocation1 [shape = 'u32[144,128]{1,0:T(1,128)}', space=vmem, size = 0x12000, scoped, tag = 'internal scratch']
  %s0 = inlined_call_operand.hbm [shape: bf16[2,16,256], index: 0, kind: input, shape index: {}]
  %s1 = inlined_call_operand.hbm [shape: bf16[2,16], index: 1, kind: input, shape index: {}]
  %s2 = inlined_call_operand.hbm [shape: bf16[2,16], index: 2, kind: input, shape index: {}]
  %s3 = inlined_call_operand.vmem [shape: bf16[16,16], index: 3, kind: input, shape index: {}]
  %s4 = inlined_call_operand.vmem [shape: f32[2,1], index: 4, kind: input, shape index: {}]
  %s5 = inlined_call_operand.hbm [shape: bf16[2,2,256], index: 5, kind: output, shape index: {0}]
  %s6 = inlined_call_operand.hbm [shape: bf16[2,2,256], index: 6, kind: output, shape index: {1}]
  %s7 = inlined_call_operand.hbm [shape: bf16[2,16,256], index: 7, kind: output, shape index: {2}]
  %8 = xla_tuple %s5, %s6, %s7
  %s9 = sld [smem:[#allocation0]]
  $region81: #{tpu_custom_call.1} parent=0
    _
  %s11 = ssub.s32 1, %s9
  %s12 = scalar_select 0, %s11, %s9
  $region1: #{tpu_custom_call.1} parent=0
    #allocation2 [shape = 'u8[16384]{0}', space=vmem, size = 0x4000, scoped, tag = 'input window, operand 0']
    #allocation3 [shape = 's32[2]{0}', space=sflag, size = 0x8, scoped, tag = 'scoped memory for tpu_custom_call.1']
    #allocation4 [shape = 's32[2]{0}', space=sflag, size = 0x8, scoped, tag = 'scoped memory for tpu_custom_call.1']
    #allocation5 [shape = 'u8[512]{0}', space=vmem, size = 0x400, scoped, tag = 'input window, operand 1, single buffered']
    #allocation6 [shape = 's32[1]{0}', space=sflag, size = 0x4, scoped, tag = 'scoped memory for tpu_custom_call.1']
    #allocation7 [shape = 'u8[512]{0}', space=vmem, size = 0x400, scoped, tag = 'input window, operand 2, single buffered']
    #allocation8 [shape = 'u8[2048]{0}', space=vmem, size = 0x800, scoped, tag = 'output window, operand 0']
    #allocation9 [shape = 'u8[2048]{0}', space=vmem, size = 0x800, scoped, tag = 'output window, operand 1']
    #allocation10 [shape = 's32[2]{0}', space=sflag, size = 0x8, scoped, tag = 'scoped memory for tpu_custom_call.1']
    #allocation11 [shape = 'u8[16384]{0}', space=vmem, size = 0x4000, scoped, tag = 'output window, operand 2']
    %13 = vsyncpa [#allocation3], 0
    %s14 = scalar_lea.sflag [#allocation3], 1
    %15 = vsyncpa %s14, 0
    %16 = vsyncpa [#allocation6], 0
    %17 = vsyncpa [#allocation4], 0
    %s18 = scalar_lea.sflag [#allocation4], 1
    %19 = vsyncpa %s18, 0
    %20 = vsyncpa [#allocation10], 0
    %s21 = scalar_lea.sflag [#allocation10], 1
    %22 = vsyncpa %s21, 0
    loop: start=0, step=1, limit=4
    $region2: #{tpu_custom_call.1} parent=1 // loop_pre_header
      _
    $region3: #{tpu_custom_call.1} parent=1 // loop_header
      %s24 = sphi 0, %s28
      %p25 = scmp.ge.s32.totalorder %s24, 4
      %s31 = sphi 0, %s43
      %s32 = sphi 0, %s39
      %s33 = sphi 0, %s31
      %s34 = sphi 0, %s32
      %s35 = sphi 0, %s33
      %s36 = sphi 0, %s34
      %s48 = sphi 0, %s50
      %s51 = sphi 0, %s48
      %s52 = sphi 0, %s51
      %s68 = sphi 0, %s52
      %s72 = sphi 0, %s72
      %s74 = sphi 0, %s72
      %s75 = sphi 0, %s74
      %s89 = sphi 0, %s75
      %s93 = sphi 0, %s93
      %s95 = sphi 0, %s93
      %s96 = sphi 0, %s95
      %s110 = sphi 0, %s96
      %s114 = sphi 0, %s114
      %s116 = sphi 0, %s114
      %s117 = sphi 0, %s116
      %s131 = sphi 0, %s117
      %s135 = sphi 0, %s135
      %s137 = sphi 0, %s135
      %s138 = sphi 0, %s137
      %s152 = sphi 0, %s138
      %s160 = sphi 0, %s162
      %s163 = sphi 0, %s160
      %s164 = sphi 0, %s163
      %s180 = sphi 0, %s164
      %s188 = sphi 0, %s190
      %s191 = sphi 0, %s188
      %s192 = sphi 0, %s191
      %s208 = sphi 0, %s192
      %s216 = sphi 0, %s218
      %s219 = sphi 0, %s216
      %s220 = sphi 0, %s219
      %s236 = sphi 0, %s220
    $region4: #{tpu_custom_call.1} parent=1 // loop_header_branch
      %27 = sbr.rel (%p25) target = $region8
    $region5: #{tpu_custom_call.1} parent=1 // loop_body
      %s29 = ssub.s32 %s24, 1
      %s30 = ssub.s32 %s24, 2
      %s37 = sadd.s32 1, %s32
      %p38 = scmp.ge.s32.totalorder %s37, 1
      %s39 = scalar_select %p38, 0, %s37
      %s40 = sadd.s32 1, %s31
      %s41 = scalar_select %p38, %s40, %s31
      %p42 = scmp.ge.s32.totalorder %s41, 2
      %s43 = scalar_select %p42, 0, %s41
      %s44 = ssub.s32 %s31, %s43
      %s45 = ssub.s32 %s32, %s39
      %s46 = sor.u32 %s44, %s45
      %p47 = scmp.eq.s32.totalorder %s46, 0
      %s49 = sadd.s32 %s48, 1
      %s50 = scalar_select %p47, %s48, %s49
      %p53 = pneg %p47
      %p54 = scmp.eq.s32.totalorder %s24, 1
      %p55 = por %p53, %p54
      %p56 = scmp.ne.s32.totalorder %s48, %s51
      %p57 = scmp.eq.s32.totalorder %s24, 0
      %p58 = por %p56, %p57
      %p59 = scmp.ne.s32.totalorder %s48, %s51
      %p60 = scmp.eq.s32.totalorder %s29, 1
      %p61 = por %p59, %p60
      %p62 = scmp.ne.s32.totalorder %s51, %s52
      %p63 = scmp.eq.s32.totalorder %s29, 0
      %p64 = por %p62, %p63
      %p65 = scmp.ne.s32.totalorder %s51, %s52
      %p66 = scmp.eq.s32.totalorder %s30, 1
      %p67 = por %p65, %p66
      %p69 = scmp.ne.s32.totalorder %s52, %s68
      %p70 = scmp.eq.s32.totalorder %s30, 0
      %p71 = por %p69, %p70
      %s73 = sadd.s32 %s72, 1
      %p76 = scmp.eq.s32.totalorder %s24, 1
      %p77 = scmp.ne.s32.totalorder %s72, %s74
      %p78 = scmp.eq.s32.totalorder %s24, 0
      %p79 = por %p77, %p78
      %p80 = scmp.ne.s32.totalorder %s72, %s74
      %p81 = scmp.eq.s32.totalorder %s29, 1
      %p82 = por %p80, %p81
      %p83 = scmp.ne.s32.totalorder %s74, %s75
      %p84 = scmp.eq.s32.totalorder %s29, 0
      %p85 = por %p83, %p84
      %p86 = scmp.ne.s32.totalorder %s74, %s75
      %p87 = scmp.eq.s32.totalorder %s30, 1
      %p88 = por %p86, %p87
      %p90 = scmp.ne.s32.totalorder %s75, %s89
      %p91 = scmp.eq.s32.totalorder %s30, 0
      %p92 = por %p90, %p91
      %s94 = sadd.s32 %s93, 1
      %p97 = scmp.eq.s32.totalorder %s24, 1
      %p98 = scmp.ne.s32.totalorder %s93, %s95
      %p99 = scmp.eq.s32.totalorder %s24, 0
      %p100 = por %p98, %p99
      %p101 = scmp.ne.s32.totalorder %s93, %s95
      %p102 = scmp.eq.s32.totalorder %s29, 1
      %p103 = por %p101, %p102
      %p104 = scmp.ne.s32.totalorder %s95, %s96
      %p105 = scmp.eq.s32.totalorder %s29, 0
      %p106 = por %p104, %p105
      %p107 = scmp.ne.s32.totalorder %s95, %s96
      %p108 = scmp.eq.s32.totalorder %s30, 1
      %p109 = por %p107, %p108
      %p111 = scmp.ne.s32.totalorder %s96, %s110
      %p112 = scmp.eq.s32.totalorder %s30, 0
      %p113 = por %p111, %p112
      %s115 = sadd.s32 %s114, 1
      %p118 = scmp.eq.s32.totalorder %s24, 1
      %p119 = scmp.ne.s32.totalorder %s114, %s116
      %p120 = scmp.eq.s32.totalorder %s24, 0
      %p121 = por %p119, %p120
      %p122 = scmp.ne.s32.totalorder %s114, %s116
      %p123 = scmp.eq.s32.totalorder %s29, 1
      %p124 = por %p122, %p123
      %p125 = scmp.ne.s32.totalorder %s116, %s117
      %p126 = scmp.eq.s32.totalorder %s29, 0
      %p127 = por %p125, %p126
      %p128 = scmp.ne.s32.totalorder %s116, %s117
      %p129 = scmp.eq.s32.totalorder %s30, 1
      %p130 = por %p128, %p129
      %p132 = scmp.ne.s32.totalorder %s117, %s131
      %p133 = scmp.eq.s32.totalorder %s30, 0
      %p134 = por %p132, %p133
      %s136 = sadd.s32 %s135, 1
      %p139 = scmp.eq.s32.totalorder %s24, 1
      %p140 = scmp.ne.s32.totalorder %s135, %s137
      %p141 = scmp.eq.s32.totalorder %s24, 0
      %p142 = por %p140, %p141
      %p143 = scmp.ne.s32.totalorder %s135, %s137
      %p144 = scmp.eq.s32.totalorder %s29, 1
      %p145 = por %p143, %p144
      %p146 = scmp.ne.s32.totalorder %s137, %s138
      %p147 = scmp.eq.s32.totalorder %s29, 0
      %p148 = por %p146, %p147
      %p149 = scmp.ne.s32.totalorder %s137, %s138
      %p150 = scmp.eq.s32.totalorder %s30, 1
      %p151 = por %p149, %p150
      %p153 = scmp.ne.s32.totalorder %s138, %s152
      %p154 = scmp.eq.s32.totalorder %s30, 0
      %p155 = por %p153, %p154
      %s156 = ssub.s32 %s31, %s43
      %s157 = ssub.s32 %s32, %s39
      %s158 = sor.u32 %s156, %s157
      %p159 = scmp.eq.s32.totalorder %s158, 0
      %s161 = sadd.s32 %s160, 1
      %s162 = scalar_select %p159, %s160, %s161
      %p165 = pneg %p159
      %p166 = scmp.eq.s32.totalorder %s24, 1
      %p167 = por %p165, %p166
      %p168 = scmp.ne.s32.totalorder %s160, %s163
      %p169 = scmp.eq.s32.totalorder %s24, 0
      %p170 = por %p168, %p169
      %p171 = scmp.ne.s32.totalorder %s160, %s163
      %p172 = scmp.eq.s32.totalorder %s29, 1
      %p173 = por %p171, %p172
      %p174 = scmp.ne.s32.totalorder %s163, %s164
      %p175 = scmp.eq.s32.totalorder %s29, 0
      %p176 = por %p174, %p175
      %p177 = scmp.ne.s32.totalorder %s163, %s164
      %p178 = scmp.eq.s32.totalorder %s30, 1
      %p179 = por %p177, %p178
      %p181 = scmp.ne.s32.totalorder %s164, %s180
      %p182 = scmp.eq.s32.totalorder %s30, 0
      %p183 = por %p181, %p182
      %s184 = ssub.s32 %s31, %s43
      %s185 = ssub.s32 %s32, %s39
      %s186 = sor.u32 %s184, %s185
      %p187 = scmp.eq.s32.totalorder %s186, 0
      %s189 = sadd.s32 %s188, 1
      %s190 = scalar_select %p187, %s188, %s189
      %p193 = pneg %p187
      %p194 = scmp.eq.s32.totalorder %s24, 1
      %p195 = por %p193, %p194
      %p196 = scmp.ne.s32.totalorder %s188, %s191
      %p197 = scmp.eq.s32.totalorder %s24, 0
      %p198 = por %p196, %p197
      %p199 = scmp.ne.s32.totalorder %s188, %s191
      %p200 = scmp.eq.s32.totalorder %s29, 1
      %p201 = por %p199, %p200
      %p202 = scmp.ne.s32.totalorder %s191, %s192
      %p203 = scmp.eq.s32.totalorder %s29, 0
      %p204 = por %p202, %p203
      %p205 = scmp.ne.s32.totalorder %s191, %s192
      %p206 = scmp.eq.s32.totalorder %s30, 1
      %p207 = por %p205, %p206
      %p209 = scmp.ne.s32.totalorder %s192, %s208
      %p210 = scmp.eq.s32.totalorder %s30, 0
      %p211 = por %p209, %p210
      %s212 = ssub.s32 %s31, %s43
      %s213 = ssub.s32 %s32, %s39
      %s214 = sor.u32 %s212, %s213
      %p215 = scmp.eq.s32.totalorder %s214, 0
      %s217 = sadd.s32 %s216, 1
      %s218 = scalar_select %p215, %s216, %s217
      %p221 = pneg %p215
      %p222 = scmp.eq.s32.totalorder %s24, 1
      %p223 = por %p221, %p222
      %p224 = scmp.ne.s32.totalorder %s216, %s219
      %p225 = scmp.eq.s32.totalorder %s24, 0
      %p226 = por %p224, %p225
      %p227 = scmp.ne.s32.totalorder %s216, %s219
      %p228 = scmp.eq.s32.totalorder %s29, 1
      %p229 = por %p227, %p228
      %p230 = scmp.ne.s32.totalorder %s219, %s220
      %p231 = scmp.eq.s32.totalorder %s29, 0
      %p232 = por %p230, %p231
      %p233 = scmp.ne.s32.totalorder %s219, %s220
      %p234 = scmp.eq.s32.totalorder %s30, 1
      %p235 = por %p233, %p234
      %p237 = scmp.ne.s32.totalorder %s220, %s236
      %p238 = scmp.eq.s32.totalorder %s30, 0
      %p239 = por %p237, %p238
      %p240 = scmp.le.s32.totalorder 1, %s24
      %p241 = scmp.lt.s32.totalorder %s24, 3
      %p242 = pnand %p240, %p241
      %p243 = pneg %p242
      // Predicated region
      $region9: #{tpu_custom_call.1} parent=5 // pred_check
        _
      $region10: #{tpu_custom_call.1} parent=5 // pred_check_branch
        %245 = sbr.rel (%p242) target = $region12
      $region11: #{tpu_custom_call.1} parent=5 // pred_region
        %s246 = ssub.s32 %s24, 1
        // Predicated region
        $region13: #{tpu_custom_call.1} parent=11 // pred_check
          %p247 = pneg %p85
        $region14: #{tpu_custom_call.1} parent=11 // pred_check_branch
          %249 = sbr.rel (%p247) target = $region16
        $region15: #{tpu_custom_call.1} parent=11 // pred_region
          %s251 = ssub.s32 16, 16
          %252 = vsyncadd [#allocation6], %s251
          %s254 = sshll.u32 [#allocation5], 4
          %s255 = int_to_ptr.vmem [resolvable:$true] %s254
          %257 = dma.hbm_to_vmem [thread:$0]  %s1, 16, %s255, [#allocation6]
        $region16: #{tpu_custom_call.1} parent=11 // pred_fallthru
          _
        // Predicated region
        $region17: #{tpu_custom_call.1} parent=11 // pred_check
          %p258 = pneg %p106
        $region18: #{tpu_custom_call.1} parent=11 // pred_check_branch
          %260 = sbr.rel (%p258) target = $region20
        $region19: #{tpu_custom_call.1} parent=11 // pred_region
          %s262 = ssub.s32 16, 16
          %263 = vsyncadd [#allocation6], %s262
          %s265 = sshll.u32 [#allocation7], 4
          %s266 = int_to_ptr.vmem [resolvable:$true] %s265
          %268 = dma.hbm_to_vmem [thread:$0]  %s2, 16, %s266, [#allocation6]
        $region20: #{tpu_custom_call.1} parent=11 // pred_fallthru
          _
        // Predicated region
        $region21: #{tpu_custom_call.1} parent=11 // pred_check
          %p269 = pneg %p127
        $region22: #{tpu_custom_call.1} parent=11 // pred_check_branch
          %271 = sbr.rel (%p269) target = $region24
        $region23: #{tpu_custom_call.1} parent=11 // pred_region
          _
        $region24: #{tpu_custom_call.1} parent=11 // pred_fallthru
          _
        // Predicated region
        $region25: #{tpu_custom_call.1} parent=11 // pred_check
          %p272 = pneg %p148
        $region26: #{tpu_custom_call.1} parent=11 // pred_check_branch
          %274 = sbr.rel (%p272) target = $region28
        $region27: #{tpu_custom_call.1} parent=11 // pred_region
          _
        $region28: #{tpu_custom_call.1} parent=11 // pred_fallthru
          _
      $region12: #{tpu_custom_call.1} parent=5 // pred_fallthru
        _
      %p275 = scmp.lt.s32.totalorder %s24, 2
      // Predicated region
      $region29: #{tpu_custom_call.1} parent=5 // pred_check
        %p276 = pneg %p275
      $region30: #{tpu_custom_call.1} parent=5 // pred_check_branch
        %278 = sbr.rel (%p276) target = $region32
      $region31: #{tpu_custom_call.1} parent=5 // pred_region
        // Predicated region
        $region33: #{tpu_custom_call.1} parent=31 // pred_check
          %p279 = pneg %p58
        $region34: #{tpu_custom_call.1} parent=31 // pred_check_branch
          %281 = sbr.rel (%p279) target = $region36
        $region35: #{tpu_custom_call.1} parent=31 // pred_region
          %s282 = sand.u32 %s48, 1
          %s283 = scalar_lea.sflag [#allocation3], %s282
          %s284 = sand.u32 %s48, 1
          %s285 = smul.addr %s284, 16
          %s286 = scalar_lea.vmem [#allocation2], %s285
          %s287 = smul.u32 2, %s32
          %s289 = ssub.s32 256, 256
          %290 = vsyncadd %s283, %s289
          %s291 = smul.addr %s31, 4
          %s292 = sadd.s32 %s287, %s291
          %s293 = smul.addr %s292, 64
          %s294 = scalar_lea.hbm %s0, %s293
          %s295 = sshll.u32 %s286, 4
          %s296 = int_to_ptr.vmem [resolvable:$true] %s295
          %301 = dma.hbm_to_vmem [thread:$0]  %s294, 256, %s296, %s283, 128, 128, 8
        $region36: #{tpu_custom_call.1} parent=31 // pred_fallthru
          _
      $region32: #{tpu_custom_call.1} parent=5 // pred_fallthru
        _
      %p302 = scmp.le.s32.totalorder 1, %s24
      %p303 = scmp.lt.s32.totalorder %s24, 3
      %p304 = pnand %p302, %p303
      %p305 = pneg %p304
      // Predicated region
      $region37: #{tpu_custom_call.1} parent=5 // pred_check
        _
      $region38: #{tpu_custom_call.1} parent=5 // pred_check_branch
        %307 = sbr.rel (%p304) target = $region40
      $region39: #{tpu_custom_call.1} parent=5 // pred_region
        %s308 = ssub.s32 %s24, 1
        %s309 = sand.u32 %s51, 1
        %s310 = scalar_lea.sflag [#allocation3], %s309
        %s311 = sand.u32 %s51, 1
        %s312 = smul.addr %s311, 16
        %s313 = scalar_lea.vmem [#allocation2], %s312
        // Predicated region
        $region41: #{tpu_custom_call.1} parent=39 // pred_check
          %p314 = pneg %p64
        $region42: #{tpu_custom_call.1} parent=39 // pred_check_branch
          %316 = sbr.rel (%p314) target = $region44
        $region43: #{tpu_custom_call.1} parent=39 // pred_region
          %317 = dma.done %s310, 256
        $region44: #{tpu_custom_call.1} parent=39 // pred_fallthru
          _
        // Predicated region
        $region45: #{tpu_custom_call.1} parent=39 // pred_check
          %p318 = pneg %p85
        $region46: #{tpu_custom_call.1} parent=39 // pred_check_branch
          %320 = sbr.rel (%p318) target = $region48
        $region47: #{tpu_custom_call.1} parent=39 // pred_region
          %321 = dma.done [#allocation6], 16
        $region48: #{tpu_custom_call.1} parent=39 // pred_fallthru
          _
        // Predicated region
        $region49: #{tpu_custom_call.1} parent=39 // pred_check
          %p322 = pneg %p106
        $region50: #{tpu_custom_call.1} parent=39 // pred_check_branch
          %324 = sbr.rel (%p322) target = $region52
        $region51: #{tpu_custom_call.1} parent=39 // pred_region
          %325 = dma.done [#allocation6], 16
        $region52: #{tpu_custom_call.1} parent=39 // pred_fallthru
          _
        %s326 = sand.u32 %s51, 1
        %s327 = scalar_lea.sflag [#allocation3], %s326
        %s328 = sand.u32 %s51, 1
        %s329 = smul.addr %s328, 16
        %s330 = scalar_lea.vmem [#allocation2], %s329
        %p331 = pneg %p64
        %p332 = pneg %p61
        %p333 = pneg %p85
        %p334 = pneg %p82
        %p335 = pneg %p106
        %p336 = pneg %p103
        %p337 = pneg %p127
        %p338 = pneg %p124
        %p339 = pneg %p148
        %p340 = pneg %p145
        %p341 = pneg %p176
        %p342 = pneg %p173
        %s343 = sand.u32 %s163, 1
        %s344 = scalar_lea.sflag [#allocation4], %s343
        %s345 = sand.u32 %s163, 1
        %s346 = smul.addr %s345, 2
        %s347 = scalar_lea.vmem [#allocation8], %s346
        %p348 = pneg %p204
        %p349 = pneg %p201
        %s350 = sand.u32 %s29, 1
        %s351 = scalar_lea.sflag [#allocation10], %s350
        %s352 = sand.u32 %s191, 1
        %s353 = smul.addr %s352, 2
        %s354 = scalar_lea.vmem [#allocation9], %s353
        %p355 = pneg %p232
        %p356 = pneg %p229
        %s357 = sand.u32 %s29, 1
        %s358 = scalar_lea.sflag [#allocation10], %s357
        %s359 = sand.u32 %s219, 1
        %s360 = smul.addr %s359, 16
        %s361 = scalar_lea.vmem [#allocation11], %s360
        %s362 = smul.u32 2, %s34
        %s363 = smul.u32 2, %s34
        %s364 = smul.u32 2, %s34
        %s365 = smul.u32 2, %s34
        %v367 = vld [vmem:[%s313] sm:$0xff]
        %v368 = vld [vmem:[%s313 + $0x8] sm:$0xff]
        %v369 = vld [vmem:[#allocation5] sm:$0x1]
        %v370 = vld [vmem:[%s4] sm:$0x3]
        %372 = vset.pattern.permute.xlu0 0
        %373 = vperm.xlu0 %372, %v370
        %v374 = vpop.permute.xlu0 %373
        %v378 = vunpack.c.l.b16 %v367
        %v379 = vunpack.c.h.b16 %v367
        %v380 = vunpack.c.l.b16 %v368
        %v381 = vunpack.c.h.b16 %v368
        %v382 = vpack.c.b16 %v380, %v378
        %v383 = vpack.c.b16 %v381, %v379
        %vm386 = vcmask 130048
        %v388 = vsel %vm386, %v369, 0
        %390 = vmatprep.subr.bf16.mxu0 0
        %391 = vmatpush1.bf16.msra.mxu0 0
        %392 = vmatprep.subr.bf16.mxu0 0
        %393 = vmatpush1.bf16.msra.mxu0 0
        %394 = vmatprep.subr.bf16.mxu0 0
        %395 = vmatpush1.bf16.msra.mxu0 0
        %396 = vmatprep.subr.bf16.mxu0 0
        %397 = vmatpush1.bf16.msra.mxu0 0
        %398 = vmatprep.subr.bf16.mxu0 0
        %399 = vmatpush1.bf16.msra.mxu0 0
        %400 = vmatprep.subr.bf16.mxu0 0
        %401 = vmatpush1.bf16.msra.mxu0 0
        %402 = vmatprep.subr.bf16.mxu0 0
        %403 = vmatpush1.bf16.msra.mxu0 0
        %404 = vmatprep.subr.bf16.mxu0 %v383
        %405 = vmatpush1.bf16.msra.mxu0 %v382
        %406 = vmatprep.subr.bf16.mxu0 0
        %407 = vmatpush2.bf16.msra.mxu0 0
        %408 = vmatprep.subr.bf16.mxu0 0
        %409 = vmatpush2.bf16.msra.mxu0 0
        %410 = vmatprep.subr.bf16.mxu0 0
        %411 = vmatpush2.bf16.msra.mxu0 0
        %412 = vmatprep.subr.bf16.mxu0 0
        %413 = vmatpush2.bf16.msra.mxu0 0
        %414 = vmatprep.subr.bf16.mxu0 0
        %415 = vmatpush2.bf16.msra.mxu0 0
        %416 = vmatprep.subr.bf16.mxu0 0
        %417 = vmatpush2.bf16.msra.mxu0 0
        %418 = vmatprep.subr.bf16.mxu0 0
        %419 = vmatpush2.bf16.msra.mxu0 0
        %420 = vmatprep.subr.bf16.mxu0 0
        %421 = vmatpush2.bf16.msra.mxu0 0
        %422 = vmatprep.mubr.bf16.mxu0 0
        %423 = vmatmul.mubr.bf16.gmra.mxu0 %v388
        %v424 = vpop.f32.mrf.mxu0
        %v425 = vadd.f32 %v374, %v424
        %v426 = vpop.f32.mrf.mxu0
        %v427 = vadd.f32 %v374, %v426
        %v428 = vpop.f32.mrf.mxu0
        %v429 = vpop.f32.mrf.mxu0
        %430 = vdwg.mxu0
        %v431 = vpack.c.bf16 %v425, %v425
        %v432 = vpack.c.bf16 %v427, %v427
        %v435 = vcombine.low %v431, %v432
        %v437 = vunpack.c.l.s4 1966171168
        %v438 = vunpack.c.0.s8 %v437
        %v439 = vlaneseq
        %v440 = vshrl.u32 %v439, 7
        %v441 = vsub.s32 %v438, %v440
        %v442 = vrot.slane %v435, %v441
        %v444 = vunpack.c.l.s4 1966171168
        %v445 = vunpack.c.0.s8 %v444
        %v446 = vlaneseq
        %v447 = vshrl.u32 %v446, 7
        %v448 = vsub.s32 %v445, %v447
        %v449 = vrot.slane %v442, %v448
        %451 = vst [vmem:[%s347] sm:$0x3] %v449
        %v452 = vld [vmem:[#allocation7] sm:$0x1]
        %v454 = vsel %vm386, %v452, 0
        %456 = vmatprep.subr.bf16.mxu0 0
        %457 = vmatpush1.bf16.msra.mxu0 0
        %458 = vmatprep.subr.bf16.mxu0 0
        %459 = vmatpush1.bf16.msra.mxu0 0
        %460 = vmatprep.subr.bf16.mxu0 0
        %461 = vmatpush1.bf16.msra.mxu0 0
        %462 = vmatprep.subr.bf16.mxu0 0
        %463 = vmatpush1.bf16.msra.mxu0 0
        %464 = vmatprep.subr.bf16.mxu0 0
        %465 = vmatpush1.bf16.msra.mxu0 0
        %466 = vmatprep.subr.bf16.mxu0 0
        %467 = vmatpush1.bf16.msra.mxu0 0
        %468 = vmatprep.subr.bf16.mxu0 0
        %469 = vmatpush1.bf16.msra.mxu0 0
        %470 = vmatprep.subr.bf16.mxu0 %v383
        %471 = vmatpush1.bf16.msra.mxu0 %v382
        %472 = vmatprep.subr.bf16.mxu0 0
        %473 = vmatpush2.bf16.msra.mxu0 0
        %474 = vmatprep.subr.bf16.mxu0 0
        %475 = vmatpush2.bf16.msra.mxu0 0
        %476 = vmatprep.subr.bf16.mxu0 0
        %477 = vmatpush2.bf16.msra.mxu0 0
        %478 = vmatprep.subr.bf16.mxu0 0
        %479 = vmatpush2.bf16.msra.mxu0 0
        %480 = vmatprep.subr.bf16.mxu0 0
        %481 = vmatpush2.bf16.msra.mxu0 0
        %482 = vmatprep.subr.bf16.mxu0 0
        %483 = vmatpush2.bf16.msra.mxu0 0
        %484 = vmatprep.subr.bf16.mxu0 0
        %485 = vmatpush2.bf16.msra.mxu0 0
        %486 = vmatprep.subr.bf16.mxu0 0
        %487 = vmatpush2.bf16.msra.mxu0 0
        %488 = vmatprep.mubr.bf16.mxu0 0
        %489 = vmatmul.mubr.bf16.gmra.mxu0 %v454
        %v490 = vpop.f32.mrf.mxu0
        %v491 = vadd.f32 0.0, %v490
        %v492 = vpop.f32.mrf.mxu0
        %v493 = vadd.f32 0.0, %v492
        %v494 = vpop.f32.mrf.mxu0
        %v495 = vpop.f32.mrf.mxu0
        %496 = vdwg.mxu0
        %v497 = vpack.c.bf16 %v491, %v491
        %v498 = vpack.c.bf16 %v493, %v493
        %v501 = vcombine.low %v497, %v498
        %v503 = vunpack.c.l.s4 1966171168
        %v504 = vunpack.c.0.s8 %v503
        %v505 = vlaneseq
        %v506 = vshrl.u32 %v505, 7
        %v507 = vsub.s32 %v504, %v506
        %v508 = vrot.slane %v501, %v507
        %v510 = vunpack.c.l.s4 1966171168
        %v511 = vunpack.c.0.s8 %v510
        %v512 = vlaneseq
        %v513 = vshrl.u32 %v512, 7
        %v514 = vsub.s32 %v511, %v513
        %v515 = vrot.slane %v508, %v514
        %517 = vst [vmem:[%s354] sm:$0x3] %v515
        %v518 = vld [vmem:[%s3] sm:$0xf]
        %v519 = vld [vmem:[%s3 + $0x4] sm:$0xf]
        %v522 = vunpack.c.l.b16 %v518
        %v523 = vunpack.c.l.b16 %v519
        %v524 = vpack.c.b16 %v523, %v522
        %v526 = vsel %vm386, %v524, 0
        %528 = vmatprep.subr.bf16.mxu0 0
        %529 = vmatpush1.bf16.msra.mxu0 0
        %530 = vmatprep.subr.bf16.mxu0 0
        %531 = vmatpush1.bf16.msra.mxu0 0
        %532 = vmatprep.subr.bf16.mxu0 0
        %533 = vmatpush1.bf16.msra.mxu0 0
        %534 = vmatprep.subr.bf16.mxu0 0
        %535 = vmatpush1.bf16.msra.mxu0 0
        %536 = vmatprep.subr.bf16.mxu0 0
        %537 = vmatpush1.bf16.msra.mxu0 0
        %538 = vmatprep.subr.bf16.mxu0 0
        %539 = vmatpush1.bf16.msra.mxu0 0
        %540 = vmatprep.subr.bf16.mxu0 0
        %541 = vmatpush1.bf16.msra.mxu0 0
        %542 = vmatprep.subr.bf16.mxu0 %v383
        %543 = vmatpush1.bf16.msra.mxu0 %v382
        %544 = vmatprep.subr.bf16.mxu0 0
        %545 = vmatpush2.bf16.msra.mxu0 0
        %546 = vmatprep.subr.bf16.mxu0 0
        %547 = vmatpush2.bf16.msra.mxu0 0
        %548 = vmatprep.subr.bf16.mxu0 0
        %549 = vmatpush2.bf16.msra.mxu0 0
        %550 = vmatprep.subr.bf16.mxu0 0
        %551 = vmatpush2.bf16.msra.mxu0 0
        %552 = vmatprep.subr.bf16.mxu0 0
        %553 = vmatpush2.bf16.msra.mxu0 0
        %554 = vmatprep.subr.bf16.mxu0 0
        %555 = vmatpush2.bf16.msra.mxu0 0
        %556 = vmatprep.subr.bf16.mxu0 0
        %557 = vmatpush2.bf16.msra.mxu0 0
        %558 = vmatprep.subr.bf16.mxu0 0
        %559 = vmatpush2.bf16.msra.mxu0 0
        %560 = vmatprep.mubr.bf16.mxu0 0
        %561 = vmatmul.mubr.bf16.gmra.mxu0 %v526
        %v562 = vpop.f32.mrf.mxu0
        %v563 = vadd.f32 0.0, %v562
        %v564 = vpop.f32.mrf.mxu0
        %v565 = vadd.f32 0.0, %v564
        %v566 = vpop.f32.mrf.mxu0
        %v567 = vadd.f32 0.0, %v566
        %v568 = vpop.f32.mrf.mxu0
        %v569 = vadd.f32 0.0, %v568
        %570 = vdwg.mxu0
        %v571 = vpack.c.bf16 %v567, %v563
        %v572 = vpack.c.bf16 %v569, %v565
        %v575 = vunpack.c.l.b16 %v571
        %v576 = vunpack.c.l.b16 %v572
        %v577 = vunpack.c.h.b16 %v571
        %v578 = vunpack.c.h.b16 %v572
        %v579 = vpack.c.b16 %v576, %v575
        %v580 = vpack.c.b16 %v578, %v577
        %583 = vst [vmem:[%s361] sm:$0xff] %v579
        %584 = vst [vmem:[%s361 + $0x8] sm:$0xff] %v580
        %s585 = sand.u32 %s163, 1
        %s586 = scalar_lea.sflag [#allocation4], %s585
        %s587 = sand.u32 %s163, 1
        %s588 = smul.addr %s587, 2
        %s589 = scalar_lea.vmem [#allocation8], %s588
        %s590 = sand.u32 %s29, 1
        %s591 = scalar_lea.sflag [#allocation10], %s590
        %s592 = sand.u32 %s191, 1
        %s593 = smul.addr %s592, 2
        %s594 = scalar_lea.vmem [#allocation9], %s593
        %s595 = sand.u32 %s29, 1
        %s596 = scalar_lea.sflag [#allocation10], %s595
        %s597 = sand.u32 %s219, 1
        %s598 = smul.addr %s597, 16
        %s599 = scalar_lea.vmem [#allocation11], %s598
        // Predicated region
        $region53: #{tpu_custom_call.1} parent=39 // pred_check
          %p600 = pneg %p173
        $region54: #{tpu_custom_call.1} parent=39 // pred_check_branch
          %602 = sbr.rel (%p600) target = $region56
        $region55: #{tpu_custom_call.1} parent=39 // pred_region
          %s603 = smul.u32 2, %s34
          %s605 = ssub.s32 32, 32
          %606 = vsyncadd %s586, %s605
          %s607 = smul.addr %s33, 2
          %s608 = sadd.s32 %s603, %s607
          %s609 = smul.addr %s608, 16
          %s610 = scalar_lea.hbm %s5, %s609
          %s612 = sshll.u32 %s589, 4
          %s613 = int_to_ptr.vmem [resolvable:$true] %s612
          %615 = dma.vmem_to_hbm [thread:$0]  %s613, 32, %s610, %s586
        $region56: #{tpu_custom_call.1} parent=39 // pred_fallthru
          _
        // Predicated region
        $region57: #{tpu_custom_call.1} parent=39 // pred_check
          %p616 = pneg %p201
        $region58: #{tpu_custom_call.1} parent=39 // pred_check_branch
          %618 = sbr.rel (%p616) target = $region60
        $region59: #{tpu_custom_call.1} parent=39 // pred_region
          %s619 = smul.u32 2, %s34
          %s621 = ssub.s32 32, 32
          %622 = vsyncadd %s591, %s621
          %s623 = smul.addr %s33, 2
          %s624 = sadd.s32 %s619, %s623
          %s625 = smul.addr %s624, 16
          %s626 = scalar_lea.hbm %s6, %s625
          %s628 = sshll.u32 %s594, 4
          %s629 = int_to_ptr.vmem [resolvable:$true] %s628
          %631 = dma.vmem_to_hbm [thread:$0]  %s629, 32, %s626, %s591
        $region60: #{tpu_custom_call.1} parent=39 // pred_fallthru
          _
        // Predicated region
        $region61: #{tpu_custom_call.1} parent=39 // pred_check
          %p632 = pneg %p229
        $region62: #{tpu_custom_call.1} parent=39 // pred_check_branch
          %634 = sbr.rel (%p632) target = $region64
        $region63: #{tpu_custom_call.1} parent=39 // pred_region
          %s635 = smul.u32 2, %s34
          %s637 = ssub.s32 256, 256
          %638 = vsyncadd %s596, %s637
          %s639 = smul.addr %s33, 4
          %s640 = sadd.s32 %s635, %s639
          %s641 = smul.addr %s640, 64
          %s642 = scalar_lea.hbm %s7, %s641
          %s643 = sshll.u32 %s599, 4
          %s644 = int_to_ptr.vmem [resolvable:$true] %s643
          %649 = dma.vmem_to_hbm [thread:$0]  %s644, 256, %s642, %s596, 128, 128, 8
        $region64: #{tpu_custom_call.1} parent=39 // pred_fallthru
          _
      $region40: #{tpu_custom_call.1} parent=5 // pred_fallthru
        _
      %p650 = scmp.le.s32.totalorder 2, %s24
      // Predicated region
      $region65: #{tpu_custom_call.1} parent=5 // pred_check
        %p651 = pneg %p650
      $region66: #{tpu_custom_call.1} parent=5 // pred_check_branch
        %653 = sbr.rel (%p651) target = $region68
      $region67: #{tpu_custom_call.1} parent=5 // pred_region
        %s654 = ssub.s32 %s24, 2
        // Predicated region
        $region69: #{tpu_custom_call.1} parent=67 // pred_check
          %p655 = pneg %p179
        $region70: #{tpu_custom_call.1} parent=67 // pred_check_branch
          %657 = sbr.rel (%p655) target = $region72
        $region71: #{tpu_custom_call.1} parent=67 // pred_region
          %s658 = sand.u32 %s164, 1
          %s659 = scalar_lea.sflag [#allocation4], %s658
          %s660 = sand.u32 %s164, 1
          %s661 = smul.addr %s660, 2
          %s662 = scalar_lea.vmem [#allocation8], %s661
          %663 = dma.done %s659, 32
        $region72: #{tpu_custom_call.1} parent=67 // pred_fallthru
          _
        // Predicated region
        $region73: #{tpu_custom_call.1} parent=67 // pred_check
          %p664 = pneg %p207
        $region74: #{tpu_custom_call.1} parent=67 // pred_check_branch
          %666 = sbr.rel (%p664) target = $region76
        $region75: #{tpu_custom_call.1} parent=67 // pred_region
          %s667 = sand.u32 %s30, 1
          %s668 = scalar_lea.sflag [#allocation10], %s667
          %s669 = sand.u32 %s192, 1
          %s670 = smul.addr %s669, 2
          %s671 = scalar_lea.vmem [#allocation9], %s670
          %672 = dma.done %s668, 32
        $region76: #{tpu_custom_call.1} parent=67 // pred_fallthru
          _
        // Predicated region
        $region77: #{tpu_custom_call.1} parent=67 // pred_check
          %p673 = pneg %p235
        $region78: #{tpu_custom_call.1} parent=67 // pred_check_branch
          %675 = sbr.rel (%p673) target = $region80
        $region79: #{tpu_custom_call.1} parent=67 // pred_region
          %s676 = sand.u32 %s30, 1
          %s677 = scalar_lea.sflag [#allocation10], %s676
          %s678 = sand.u32 %s220, 1
          %s679 = smul.addr %s678, 16
          %s680 = scalar_lea.vmem [#allocation11], %s679
          %681 = dma.done %s677, 256
        $region80: #{tpu_custom_call.1} parent=67 // pred_fallthru
          _
      $region68: #{tpu_custom_call.1} parent=5 // pred_fallthru
        _
    $region6: #{tpu_custom_call.1} parent=1 // loop_footer
      %s28 = sadd.s32 1, %s24
    $region7: #{tpu_custom_call.1} parent=1 // loop_footer_branch
      %23 = sbr.rel target = $region3
    $region8: #{tpu_custom_call.1} parent=1 // loop_exit
      _
    %682 = vsyncpa [#allocation3], 1
    %s683 = scalar_lea.sflag [#allocation3], 1
    %684 = vsyncpa %s683, 1
    %685 = vsyncpa [#allocation6], 1
    %686 = vsyncpa [#allocation4], 1
    %s687 = scalar_lea.sflag [#allocation4], 1
    %688 = vsyncpa %s687, 1
    %689 = vsyncpa [#allocation10], 1
    %s690 = scalar_lea.sflag [#allocation10], 1
    %691 = vsyncpa %s690, 1

</llo_original>
